<compile_context>
chip_gen: v6e
topology: v6e:2x2x1
jax: 0.10.0
libtpu: 0.0.40
codegen_flags: <defaults>
</compile_context>

<pallas_src>
import functools

import jax
import jax.numpy as jnp
from jax import lax
from jax.experimental import pallas as pl
from jax.experimental.pallas import tpu as pltpu


def _round_up(x, mult):
    return ((x + mult - 1) // mult) * mult


def _vmem_capacity_bytes():
    """Generation-aware VMEM capacity (64 MiB/TC on v7x, 128 MiB on v5e/v6e)."""
    try:
        cap = getattr(pltpu.get_tpu_info(), "vmem_capacity_bytes", None)
        if cap:
            return int(cap)
    except Exception:
        pass
    return 64 * 2 ** 20  # conservative fallback (v7x per-TensorCore figure)


def _select_tile_c(C, E, B, w_bytes, requested=None):
    """Pick a lane-dense class tile (multiple of 128).

    Targets: (a) fit double-buffered streams + in-kernel temporaries in a
    generation-aware VMEM budget, (b) >= 4 grid steps (>= 2 per v7x TC) when C
    allows, (c) an even number of grid steps for megacore load balance."""
    cap = _vmem_capacity_bytes()
    budget = (cap * 3) // 8                      # pipeline buffers + temporaries
    vmem_limit = min(cap // 2, 100 * 2 ** 20)    # scoped limit, with headroom

    # VMEM bytes per class held concurrently:
    #   2 x double-buffered streamed W rows
    # + 1 x f32 temp row for the norm reduce (worst case, if cast->square
    #   does not fuse into the reduction)
    # + double-buffered f32 output rows + the f32 cos temp.
    per_class = 2 * E * w_bytes + E * 4 + 3 * B * 4
    # Resident embeddings / labels / small x temporaries (tiny at head shapes).
    resident = 4 * B * E * 4 + 2 * B * E * 2 + 4 * B * 4 + 64 * 1024

    tc_cap = max(128, ((budget - resident) // per_class) // 128 * 128)
    tc_steps = max(128, _round_up(pl.cdiv(C, 4), 128))   # aim for >= 4 steps
    tc = min(tc_cap, tc_steps, _round_up(C, 128))
    if requested is not None:
        tc = min(tc, max(128, _round_up(requested, 128)))
    tc = max(tc, 128)

    # Prefer an even number of grid steps so the two v7x TensorCores balance.
    steps = pl.cdiv(C, tc)
    if steps >= 3 and steps % 2 == 1:
        tc_even = max(128, _round_up(pl.cdiv(C, steps + 1), 128))
        if tc_even <= tc_cap and pl.cdiv(C, tc_even) % 2 == 0:
            tc = tc_even
    return tc, int(vmem_limit)


def _cosmargin_kernel(xs_ref, w_ref, lab_ref, o_ref, *, s, m, tile_c, n_classes,
                      training):
    # xs_ref:  (B, E)       raw embeddings, resident across the class grid
    # w_ref:   (tile_c, E)  one streamed class-weight tile (bf16 preferred)
    # lab_ref: (B, 1)       int32 labels, resident
    # o_ref:   (B, tile_c)  lane-dense output tile
    j = pl.program_id(0)

    # --- embedding normalisation, done in-kernel (removes the wrapper launch).
    # B*E is tiny, so recomputing per class tile is cheaper and safer than a
    # pl.when(j == 0) scratch init (skipped on the 2nd TC under megacore).
    # Matches the backbone's `.renorm(2, 0, 1e-5).mul(1e5)` for non-degenerate
    # rows and F.normalize's clamp_min(norm, 1e-12) eps handling.
    x = xs_ref[...].astype(jnp.float32)
    x_n = x * lax.rsqrt(jnp.maximum(jnp.sum(x * x, axis=-1, keepdims=True),
                                    jnp.float32(1e-24)))
    x_bf = x_n.astype(jnp.bfloat16)

    # --- weight tile: bf16 straight to the MXU; only the per-class inverse
    # norm is computed in f32 and applied as a column scale on the (B, tile_c)
    # result (f32 epilogue -- no bf16 element-wise math, v5e-friendly).
    w = w_ref[...]
    w_bf = w if w.dtype == jnp.bfloat16 else w.astype(jnp.bfloat16)
    w32 = w.astype(jnp.float32)
    inv_norm = lax.rsqrt(jnp.maximum(
        jnp.sum(w32 * w32, axis=-1, keepdims=True), jnp.float32(1e-24)))  # (tc,1)

    # NT contraction on E keeps the (C, E) HBM layout => one contiguous DMA per
    # weight tile; any transpose stays on the idle XLU (no materialised w.T).
    cos = lax.dot_general(x_bf, w_bf, (((1,), (1,)), ((), ())),
                          preferred_element_type=jnp.float32)       # (B, tc) f32
    cos = cos * jnp.transpose(inv_norm)            # (1, tc) column scale

    ragged = (n_classes % tile_c) != 0
    if training or ragged:
        col_ids = lax.broadcasted_iota(jnp.int32, cos.shape, 1) + j * tile_c
    if training:
        cos = jnp.where(col_ids == lab_ref[...], cos - jnp.float32(m), cos)
        cos = cos * jnp.float32(s)
    if ragged:
        # Zero the out-of-range tail columns of the last (partial) class tile
        # so no garbage/NaN from out-of-bounds weight rows reaches the store.
        cos = jnp.where(col_ids < n_classes, cos, jnp.float32(0.0))

    o_ref[...] = cos.astype(o_ref.dtype)


def cos_margin_forward(xs, weight, labels, *, s=64.0, m=0.35, training=True,
                       tile_c=None):
    """Pallas CosMargin forward.

    xs: (B, E) embeddings, weight: (C, E), labels: (B,) int.

    The wrapper performs NO per-call HBM passes over the weight: it streams it
    in whatever dtype it is stored in (store the persistent head parameter in
    bf16 to halve the dominant HBM stream), does not pad the class dimension
    (the ragged last tile is handled in-kernel), and writes the (B, C) output
    directly (no post-slice).
    """
    B, E = xs.shape
    C, E2 = weight.shape
    assert E == E2, "embedding dims must match"

    w_bytes = jnp.dtype(weight.dtype).itemsize
    tc, vmem_limit = _select_tile_c(C, E, B, w_bytes, requested=tile_c)
    grid = (pl.cdiv(C, tc),)

    labels_2d = labels.reshape(B, 1).astype(jnp.int32)

    kernel = functools.partial(_cosmargin_kernel, s=float(s), m=float(m),
                               tile_c=tc, n_classes=C, training=training)

    return pl.pallas_call(
        kernel,
        out_shape=jax.ShapeDtypeStruct((B, C), jnp.float32),
        grid_spec=pltpu.PrefetchScalarGridSpec(
            num_scalar_prefetch=0,
            grid=grid,
            in_specs=[
                pl.BlockSpec((B, E), lambda j: (0, 0)),    # embeddings (resident)
                pl.BlockSpec((tc, E), lambda j: (j, 0)),   # streamed weight tile
                pl.BlockSpec((B, 1), lambda j: (0, 0)),    # labels (resident)
            ],
            out_specs=pl.BlockSpec((B, tc), lambda j: (0, j)),   # lane-dense
        ),
        compiler_params=pltpu.CompilerParams(
            dimension_semantics=("parallel",),   # v7x: shard class tiles over TCs
            vmem_limit_bytes=vmem_limit),
    )(xs, weight, labels_2d)


def cos_margin_reference(xs, weight, labels, *, s=64.0, m=0.35, training=True,
                         match_kernel_precision=False):
    x = xs.astype(jnp.float32)
    xn = x / jnp.maximum(jnp.linalg.norm(x, axis=-1, keepdims=True), 1e-12)
    if match_kernel_precision:
        # Mirror the kernel: bf16 matmul operands, f32 norms / epilogue.
        xn = xn.astype(jnp.bfloat16).astype(jnp.float32)
    w = weight.astype(jnp.float32)
    wn = w / jnp.maximum(jnp.linalg.norm(w, axis=-1, keepdims=True), 1e-12)
    cos = jnp.dot(xn, wn.T, precision=lax.Precision.HIGHEST)
    if not training:
        return cos
    onehot = jax.nn.one_hot(labels, weight.shape[0], dtype=cos.dtype)
    return (cos - m * onehot) * s


if __name__ == "__main__":
    # Head-sized shapes: embedding_size=256, classnum=1000 (deliberately NOT a
    # multiple of the class tile, to exercise the ragged last tile), batch=8.
    classnum, embedding_size, batch = 1000, 256, 8
    s, m = 64.0, 0.35

    key = jax.random.PRNGKey(0)
    k_x, k_w, k_l = jax.random.split(key, 3)

    bound = (6.0 / (classnum + embedding_size)) ** 0.5       # xavier_uniform_
    weight_f32 = jax.random.uniform(k_w, (classnum, embedding_size),
                                    dtype=jnp.float32, minval=-bound, maxval=bound)
    # Persistent head parameter stored in bf16: halves the dominant HBM stream
    # and avoids any per-call cast/pad in the wrapper.
    weight = weight_f32.astype(jnp.bfloat16)

    xs = jax.random.normal(k_x, (batch, embedding_size), dtype=jnp.float32)
    labels = jax.random.randint(k_l, (batch,), 0, classnum, dtype=jnp.int32)

    # --- training-mode forward ---
    out_train = jax.block_until_ready(
        cos_margin_forward(xs, weight, labels, s=s, m=m, training=True))
    assert out_train.shape == (batch, classnum)
    assert bool(jnp.all(jnp.isfinite(out_train)))

    # Precision-matched reference (bf16 operands, f32 norms/epilogue): only MXU
    # accumulation order separates kernel and reference.
    ref_match = cos_margin_reference(xs, weight, labels, s=s, m=m, training=True,
                                     match_kernel_precision=True)
    assert jnp.allclose(out_train, ref_match, atol=0.1, rtol=1e-3), \
        "mismatch vs precision-matched reference"

    # --- eval-mode forward (raw cosines) vs full-f32 reference ---
    out_eval = jax.block_until_ready(
        cos_margin_forward(xs, weight, labels, s=s, m=m, training=False))
    ref_f32 = cos_margin_reference(xs, weight_f32, labels, s=s, m=m,
                                   training=False)
    assert out_eval.shape == (batch, classnum)
    assert jnp.allclose(out_eval, ref_f32, atol=0.03), \
        "eval cosines deviate from f32 reference beyond bf16 tolerance"

    # --- internal consistency: training output == (eval cosines - m*onehot)*s
    onehot = jax.nn.one_hot(labels, classnum, dtype=jnp.float32)
    recon = (out_eval - m * onehot) * s
    assert jnp.allclose(out_train, recon, atol=1e-3), \
        "margin/scale epilogue mismatch between training and eval paths"

    print("KERNEL_OK")
</pallas_src>

<mosaic_0001>
module attributes {stable_mosaic.version = 11 : i64} {
  func.func @_cosmargin_kernel(%arg0: i32, %arg1: memref<8x256xf32, #tpu.memory_space<vmem>>, %arg2: memref<256x256xbf16, #tpu.memory_space<vmem>>, %arg3: memref<8x1xi32, #tpu.memory_space<vmem>>, %arg4: memref<8x256xf32, #tpu.memory_space<vmem>>) attributes {dimension_semantics = [#tpu.dimension_semantics<parallel>], iteration_bounds = array<i64: 4>, scalar_prefetch = 0 : i64, scratch_operands = 0 : i64, tpu.core_type = #tpu.core_type<tc>, window_params = [{pipeline_mode = #tpu.pipeline_mode<synchronous>, transform_indices = @transform_0, window_bounds = array<i64: 8, 256>}, {transform_indices = @transform_1, window_bounds = array<i64: 256, 256>}, {pipeline_mode = #tpu.pipeline_mode<synchronous>, transform_indices = @transform_2, window_bounds = array<i64: 8, 1>}, {transform_indices = @transform_3, window_bounds = array<i64: 8, 256>}]} {
    %c0 = arith.constant 0 : index
    %c0_0 = arith.constant 0 : index
    %0 = vector.load %arg1[%c0, %c0_0] : memref<8x256xf32, #tpu.memory_space<vmem>>, vector<8x256xf32>
    %1 = arith.mulf %0, %0 : vector<8x256xf32>
    %cst = arith.constant dense<0.000000e+00> : vector<8xf32>
    %2 = vector.multi_reduction <add>, %1, %cst [1] : vector<8x256xf32> to vector<8xf32>
    %3 = vector.shape_cast %2 : vector<8xf32> to vector<8x1xf32>
    %cst_1 = arith.constant 1.000000e-24 : f32
    %4 = vector.broadcast %cst_1 : f32 to vector<8x1xf32>
    %5 = arith.maximumf %3, %4 : vector<8x1xf32>
    %6 = math.rsqrt %5 : vector<8x1xf32>
    %7 = vector.broadcast %6 : vector<8x1xf32> to vector<8x256xf32>
    %8 = arith.mulf %0, %7 : vector<8x256xf32>
    %9 = arith.truncf %8 : vector<8x256xf32> to vector<8x256xbf16>
    %c0_2 = arith.constant 0 : index
    %c0_3 = arith.constant 0 : index
    %10 = vector.load %arg2[%c0_2, %c0_3] : memref<256x256xbf16, #tpu.memory_space<vmem>>, vector<256x256xbf16>
    %11 = arith.extf %10 : vector<256x256xbf16> to vector<256x256xf32>
    %12 = arith.mulf %11, %11 : vector<256x256xf32>
    %cst_4 = arith.constant dense<0.000000e+00> : vector<256xf32>
    %13 = vector.multi_reduction <add>, %12, %cst_4 [1] : vector<256x256xf32> to vector<256xf32>
    %14 = vector.shape_cast %13 : vector<256xf32> to vector<256x1xf32>
    %cst_5 = arith.constant 1.000000e-24 : f32
    %15 = vector.broadcast %cst_5 : f32 to vector<256x1xf32>
    %16 = arith.maximumf %14, %15 : vector<256x1xf32>
    %17 = math.rsqrt %16 : vector<256x1xf32>
    %cst_6 = arith.constant dense<0.000000e+00> : vector<8x256xf32>
    %18 = tpu.matmul %9, %10, %cst_6 {dimension_numbers = #tpu.dot_dimension_numbers<[1], [1], [0], [0], [0, 0, 1, 0], [], []>} : vector<8x256xbf16>, vector<256x256xbf16>, vector<8x256xf32> -> vector<8x256xf32>
    %19 = tpu.transpose %17, [1, 0] : vector<256x1xf32> -> vector<1x256xf32>
    %20 = vector.broadcast %19 : vector<1x256xf32> to vector<8x256xf32>
    %21 = arith.mulf %18, %20 : vector<8x256xf32>
    %22 = tpu.iota {dimensions = array<i32: 1>} : vector<8x256xi32>
    %c256_i32 = arith.constant 256 : i32
    %23 = arith.muli %arg0, %c256_i32 : i32
    %24 = vector.broadcast %23 : i32 to vector<8x256xi32>
    %25 = arith.addi %22, %24 : vector<8x256xi32>
    %c0_7 = arith.constant 0 : index
    %c0_8 = arith.constant 0 : index
    %26 = vector.load %arg3[%c0_7, %c0_8] : memref<8x1xi32, #tpu.memory_space<vmem>>, vector<8x1xi32>
    %27 = vector.broadcast %26 : vector<8x1xi32> to vector<8x256xi32>
    %28 = arith.cmpi eq, %25, %27 : vector<8x256xi32>
    %cst_9 = arith.constant 3.500000e-01 : f32
    %29 = vector.broadcast %cst_9 : f32 to vector<8x256xf32>
    %30 = arith.subf %21, %29 : vector<8x256xf32>
    %31 = arith.select %28, %30, %21 : vector<8x256xi1>, vector<8x256xf32>
    %cst_10 = arith.constant 6.400000e+01 : f32
    %32 = vector.broadcast %cst_10 : f32 to vector<8x256xf32>
    %33 = arith.mulf %31, %32 : vector<8x256xf32>
    %c1000_i32 = arith.constant 1000 : i32
    %34 = vector.broadcast %c1000_i32 : i32 to vector<8x256xi32>
    %35 = arith.cmpi slt, %25, %34 : vector<8x256xi32>
    %cst_11 = arith.constant 0.000000e+00 : f32
    %36 = vector.broadcast %cst_11 : f32 to vector<8x256xf32>
    %37 = arith.select %35, %33, %36 : vector<8x256xi1>, vector<8x256xf32>
    %c0_12 = arith.constant 0 : index
    %c0_13 = arith.constant 0 : index
    %38 = vector.load %arg4[%c0_12, %c0_13] : memref<8x256xf32, #tpu.memory_space<vmem>>, vector<8x256xf32>
    tpu.vector_store %arg4[%c0_12, %c0_13], %37 {strides = array<i32>} : memref<8x256xf32, #tpu.memory_space<vmem>>, vector<8x256xf32>,
    return
  }
  func.func @transform_0(%arg0: i32) -> (i32, i32) {
    %c0_i32 = arith.constant 0 : i32
    %c0_i32_0 = arith.constant 0 : i32
    %c0_i32_1 = arith.constant 0 : i32
    return %c0_i32, %c0_i32_0 : i32, i32
  }
  func.func @transform_1(%arg0: i32) -> (i32, i32) {
    %c0_i32 = arith.constant 0 : i32
    %c0_i32_0 = arith.constant 0 : i32
    return %arg0, %c0_i32 : i32, i32
  }
  func.func @transform_2(%arg0: i32) -> (i32, i32) {
    %c0_i32 = arith.constant 0 : i32
    %c0_i32_0 = arith.constant 0 : i32
    %c0_i32_1 = arith.constant 0 : i32
    return %c0_i32, %c0_i32_0 : i32, i32
  }
  func.func @transform_3(%arg0: i32) -> (i32, i32) {
    %c0_i32 = arith.constant 0 : i32
    %c0_i32_0 = arith.constant 0 : i32
    return %c0_i32, %arg0 : i32, i32
  }
}

</mosaic_0001>

<llo_original>
// kernel: tpu_custom_call.1
$region0: #{tpu_custom_call.1}
  #allocation0 [shape = 'u32[]', space=smem, size = 0x4, offset = 0x4, fixed_abs, tag = 'smem constant byte address 0x4 - core index']
  #allocation1 [shape = 'u32[144,128]{1,0:T(1,128)}', space=vmem, size = 0x12000, scoped, tag = 'internal scratch']
  %s0 = inlined_call_operand.hbm [shape: f32[8,256], index: 0, kind: input, shape index: {}]
  %s1 = inlined_call_operand.hbm [shape: bf16[1000,256], index: 1, kind: input, shape index: {}]
  %s2 = inlined_call_operand.vmem [shape: s32[8,1], index: 2, kind: input, shape index: {}]
  %s3 = inlined_call_operand.hbm [shape: f32[8,1000], index: 3, kind: output, shape index: {}]
  %s4 = sld [smem:[#allocation0]]
  $region53: #{tpu_custom_call.1} parent=0
    _
  %s6 = ssub.s32 1, %s4
  %s7 = scalar_select 0, %s6, %s4
  $region1: #{tpu_custom_call.1} parent=0
    #allocation2 [shape = 'u8[8192]{0}', space=vmem, size = 0x2000, scoped, tag = 'input window, operand 0, single buffered']
    #allocation3 [shape = 's32[2]{0}', space=sflag, size = 0x8, scoped, tag = 'scoped memory for tpu_custom_call.1']
    #allocation4 [shape = 's32[2]{0}', space=sflag, size = 0x8, scoped, tag = 'scoped memory for tpu_custom_call.1']
    #allocation5 [shape = 'u8[262144]{0}', space=vmem, size = 0x40000, scoped, tag = 'input window, operand 1']
    #allocation6 [shape = 's32[2]{0}', space=sflag, size = 0x8, scoped, tag = 'scoped memory for tpu_custom_call.1']
    #allocation7 [shape = 'u8[16384]{0}', space=vmem, size = 0x4000, scoped, tag = 'output window, operand 0']
    %8 = vsyncpa [#allocation3], 0
    %9 = vsyncpa [#allocation6], 0
    %s10 = scalar_lea.sflag [#allocation6], 1
    %11 = vsyncpa %s10, 0
    %12 = vsyncpa [#allocation4], 0
    %s13 = scalar_lea.sflag [#allocation4], 1
    %14 = vsyncpa %s13, 0
    loop: start=0, step=1, limit=6
    $region2: #{tpu_custom_call.1} parent=1 // loop_pre_header
      _
    $region3: #{tpu_custom_call.1} parent=1 // loop_header
      %s16 = sphi 0, %s20
      %p17 = scmp.ge.s32.totalorder %s16, 6
      %s24 = sphi 0, %s24
      %s26 = sphi 0, %s24
      %s27 = sphi 0, %s26
      %s41 = sphi 0, %s27
      %s47 = sphi 0, %s49
      %s50 = sphi 0, %s47
      %s51 = sphi 0, %s50
      %s67 = sphi 0, %s51
      %s71 = sphi 0, %s71
      %s73 = sphi 0, %s71
      %s74 = sphi 0, %s73
      %s88 = sphi 0, %s74
      %s94 = sphi 0, %s96
      %s97 = sphi 0, %s94
      %s98 = sphi 0, %s97
      %s114 = sphi 0, %s98
    $region4: #{tpu_custom_call.1} parent=1 // loop_header_branch
      %19 = sbr.rel (%p17) target = $region8
    $region5: #{tpu_custom_call.1} parent=1 // loop_body
      %s21 = ssub.s32 %s16, 1
      %s22 = ssub.s32 %s16, 2
      %s23 = sadd.s32 %s16, 1
      %s25 = sadd.s32 %s24, 1
      %p28 = scmp.eq.s32.totalorder %s16, 3
      %p29 = scmp.ne.s32.totalorder %s24, %s26
      %p30 = scmp.eq.s32.totalorder %s16, 0
      %p31 = por %p29, %p30
      %p32 = scmp.ne.s32.totalorder %s24, %s26
      %p33 = scmp.eq.s32.totalorder %s21, 3
      %p34 = por %p32, %p33
      %p35 = scmp.ne.s32.totalorder %s26, %s27
      %p36 = scmp.eq.s32.totalorder %s21, 0
      %p37 = por %p35, %p36
      %p38 = scmp.ne.s32.totalorder %s26, %s27
      %p39 = scmp.eq.s32.totalorder %s22, 3
      %p40 = por %p38, %p39
      %p42 = scmp.ne.s32.totalorder %s27, %s41
      %p43 = scmp.eq.s32.totalorder %s22, 0
      %p44 = por %p42, %p43
      %s45 = ssub.s32 %s16, %s23
      %p46 = scmp.eq.s32.totalorder %s45, 0
      %s48 = sadd.s32 %s47, 1
      %s49 = scalar_select %p46, %s47, %s48
      %p52 = pneg %p46
      %p53 = scmp.eq.s32.totalorder %s16, 3
      %p54 = por %p52, %p53
      %p55 = scmp.ne.s32.totalorder %s47, %s50
      %p56 = scmp.eq.s32.totalorder %s16, 0
      %p57 = por %p55, %p56
      %p58 = scmp.ne.s32.totalorder %s47, %s50
      %p59 = scmp.eq.s32.totalorder %s21, 3
      %p60 = por %p58, %p59
      %p61 = scmp.ne.s32.totalorder %s50, %s51
      %p62 = scmp.eq.s32.totalorder %s21, 0
      %p63 = por %p61, %p62
      %p64 = scmp.ne.s32.totalorder %s50, %s51
      %p65 = scmp.eq.s32.totalorder %s22, 3
      %p66 = por %p64, %p65
      %p68 = scmp.ne.s32.totalorder %s51, %s67
      %p69 = scmp.eq.s32.totalorder %s22, 0
      %p70 = por %p68, %p69
      %s72 = sadd.s32 %s71, 1
      %p75 = scmp.eq.s32.totalorder %s16, 3
      %p76 = scmp.ne.s32.totalorder %s71, %s73
      %p77 = scmp.eq.s32.totalorder %s16, 0
      %p78 = por %p76, %p77
      %p79 = scmp.ne.s32.totalorder %s71, %s73
      %p80 = scmp.eq.s32.totalorder %s21, 3
      %p81 = por %p79, %p80
      %p82 = scmp.ne.s32.totalorder %s73, %s74
      %p83 = scmp.eq.s32.totalorder %s21, 0
      %p84 = por %p82, %p83
      %p85 = scmp.ne.s32.totalorder %s73, %s74
      %p86 = scmp.eq.s32.totalorder %s22, 3
      %p87 = por %p85, %p86
      %p89 = scmp.ne.s32.totalorder %s74, %s88
      %p90 = scmp.eq.s32.totalorder %s22, 0
      %p91 = por %p89, %p90
      %s92 = ssub.s32 %s16, %s23
      %p93 = scmp.eq.s32.totalorder %s92, 0
      %s95 = sadd.s32 %s94, 1
      %s96 = scalar_select %p93, %s94, %s95
      %p99 = pneg %p93
      %p100 = scmp.eq.s32.totalorder %s16, 3
      %p101 = por %p99, %p100
      %p102 = scmp.ne.s32.totalorder %s94, %s97
      %p103 = scmp.eq.s32.totalorder %s16, 0
      %p104 = por %p102, %p103
      %p105 = scmp.ne.s32.totalorder %s94, %s97
      %p106 = scmp.eq.s32.totalorder %s21, 3
      %p107 = por %p105, %p106
      %p108 = scmp.ne.s32.totalorder %s97, %s98
      %p109 = scmp.eq.s32.totalorder %s21, 0
      %p110 = por %p108, %p109
      %p111 = scmp.ne.s32.totalorder %s97, %s98
      %p112 = scmp.eq.s32.totalorder %s22, 3
      %p113 = por %p111, %p112
      %p115 = scmp.ne.s32.totalorder %s98, %s114
      %p116 = scmp.eq.s32.totalorder %s22, 0
      %p117 = por %p115, %p116
      %p118 = scmp.le.s32.totalorder 1, %s16
      %p119 = scmp.lt.s32.totalorder %s16, 5
      %p120 = pnand %p118, %p119
      %p121 = pneg %p120
      // Predicated region
      $region9: #{tpu_custom_call.1} parent=5 // pred_check
        _
      $region10: #{tpu_custom_call.1} parent=5 // pred_check_branch
        %123 = sbr.rel (%p120) target = $region12
      $region11: #{tpu_custom_call.1} parent=5 // pred_region
        %s124 = ssub.s32 %s16, 1
        // Predicated region
        $region13: #{tpu_custom_call.1} parent=11 // pred_check
          %p125 = pneg %p37
        $region14: #{tpu_custom_call.1} parent=11 // pred_check_branch
          %127 = sbr.rel (%p125) target = $region16
        $region15: #{tpu_custom_call.1} parent=11 // pred_region
          %s129 = ssub.s32 256, 256
          %130 = vsyncadd [#allocation3], %s129
          %s132 = sshll.u32 [#allocation2], 4
          %s133 = int_to_ptr.vmem [resolvable:$true] %s132
          %135 = dma.hbm_to_vmem [thread:$0]  %s0, 256, %s133, [#allocation3]
        $region16: #{tpu_custom_call.1} parent=11 // pred_fallthru
          _
        // Predicated region
        $region17: #{tpu_custom_call.1} parent=11 // pred_check
          %p136 = pneg %p84
        $region18: #{tpu_custom_call.1} parent=11 // pred_check_branch
          %138 = sbr.rel (%p136) target = $region20
        $region19: #{tpu_custom_call.1} parent=11 // pred_region
          _
        $region20: #{tpu_custom_call.1} parent=11 // pred_fallthru
          _
      $region12: #{tpu_custom_call.1} parent=5 // pred_fallthru
        _
      %p139 = scmp.lt.s32.totalorder %s16, 4
      // Predicated region
      $region21: #{tpu_custom_call.1} parent=5 // pred_check
        %p140 = pneg %p139
      $region22: #{tpu_custom_call.1} parent=5 // pred_check_branch
        %142 = sbr.rel (%p140) target = $region24
      $region23: #{tpu_custom_call.1} parent=5 // pred_region
        // Predicated region
        $region25: #{tpu_custom_call.1} parent=23 // pred_check
          %p143 = pneg %p57
        $region26: #{tpu_custom_call.1} parent=23 // pred_check_branch
          %145 = sbr.rel (%p143) target = $region28
        $region27: #{tpu_custom_call.1} parent=23 // pred_region
          %s146 = sand.u32 %s47, 1
          %s147 = scalar_lea.sflag [#allocation6], %s146
          %s148 = sand.u32 %s47, 1
          %s149 = smul.addr %s148, 256
          %s150 = scalar_lea.vmem [#allocation5], %s149
          %s151 = smul.u32 32, %s16
          %s152 = ssub.s32 125, %s151
          %p153 = scmp.lt.s32.totalorder %s152, 32
          %s154 = scalar_select %p153, %s152, 32
          %s155 = smul.u32 64, %s154
          %s156 = smul.u32 %s155, 2
          %s158 = ssub.s32 4096, %s156
          %159 = vsyncadd %s147, %s158
          %p160 = scmp.ne.s32.totalorder 0, %s156
          %s161 = smul.addr %s151, 2
          %s162 = smul.addr %s161, 64
          %s163 = scalar_lea.hbm %s1, %s162
          %s164 = smul.u32 8, %s154
          %s165 = sshll.u32 %s150, 4
          %s166 = int_to_ptr.vmem [resolvable:$true] %s165
          %s167 = sshll.u32 %s164, 4
          %171 = dma.hbm_to_vmem [thread:$0]  (%p160), %s163, %s167, %s166, %s147, 128, 128, 8
        $region28: #{tpu_custom_call.1} parent=23 // pred_fallthru
          _
      $region24: #{tpu_custom_call.1} parent=5 // pred_fallthru
        _
      %p172 = scmp.le.s32.totalorder 1, %s16
      %p173 = scmp.lt.s32.totalorder %s16, 5
      %p174 = pnand %p172, %p173
      %p175 = pneg %p174
      // Predicated region
      $region29: #{tpu_custom_call.1} parent=5 // pred_check
        _
      $region30: #{tpu_custom_call.1} parent=5 // pred_check_branch
        %177 = sbr.rel (%p174) target = $region32
      $region31: #{tpu_custom_call.1} parent=5 // pred_region
        %s178 = ssub.s32 %s16, 1
        // Predicated region
        $region33: #{tpu_custom_call.1} parent=31 // pred_check
          %p179 = pneg %p37
        $region34: #{tpu_custom_call.1} parent=31 // pred_check_branch
          %181 = sbr.rel (%p179) target = $region36
        $region35: #{tpu_custom_call.1} parent=31 // pred_region
          %182 = dma.done [#allocation3], 256
        $region36: #{tpu_custom_call.1} parent=31 // pred_fallthru
          _
        %s183 = sand.u32 %s50, 1
        %s184 = scalar_lea.sflag [#allocation6], %s183
        %s185 = sand.u32 %s50, 1
        %s186 = smul.addr %s185, 256
        %s187 = scalar_lea.vmem [#allocation5], %s186
        // Predicated region
        $region37: #{tpu_custom_call.1} parent=31 // pred_check
          %p188 = pneg %p63
        $region38: #{tpu_custom_call.1} parent=31 // pred_check_branch
          %190 = sbr.rel (%p188) target = $region40
        $region39: #{tpu_custom_call.1} parent=31 // pred_region
          %191 = dma.done %s184, 4096
        $region40: #{tpu_custom_call.1} parent=31 // pred_fallthru
          _
        %p192 = pneg %p37
        %p193 = pneg %p34
        %s194 = sand.u32 %s50, 1
        %s195 = scalar_lea.sflag [#allocation6], %s194
        %s196 = sand.u32 %s50, 1
        %s197 = smul.addr %s196, 256
        %s198 = scalar_lea.vmem [#allocation5], %s197
        %p199 = pneg %p63
        %p200 = pneg %p60
        %p201 = pneg %p84
        %p202 = pneg %p81
        %p203 = pneg %p110
        %p204 = pneg %p107
        %s205 = sand.u32 %s97, 1
        %s206 = scalar_lea.sflag [#allocation4], %s205
        %s207 = sand.u32 %s97, 1
        %s208 = smul.addr %s207, 16
        %s209 = scalar_lea.vmem [#allocation7], %s208
        %s210 = smul.u32 32, %s21
        %s211 = ssub.s32 125, %s210
        %p212 = scmp.lt.s32.totalorder %s211, 32
        %s213 = scalar_select %p212, %s211, 32
        %s214 = smul.u32 64, %s213
        %s215 = smul.u32 %s214, 2
        %s216 = smul.u32 2, %s21
        %v217 = vld [vmem:[#allocation2] sm:$0xff]
        %v218 = vld [vmem:[#allocation2 + $0x8] sm:$0xff]
        %v219 = vmul.f32 %v217, %v217
        %v220 = vmul.f32 %v218, %v218
        %v221 = vadd.f32 %v219, %v220
        %222 = vadd.xlane.f32.xlu0 %v221
        %v223 = vpop.xlane.xlu0 %222
        %v224 = vmax.f32 %v223, 1e-24
        %v225 = vrsqrt.pop %v224
        %v226 = vmul.f32 %v217, %v225
        %v227 = vmul.f32 %v218, %v225
        %v228 = vpack.c.bf16 %v226, %v226
        %v229 = vpack.c.bf16 %v227, %v227
        %v230 = vld [vmem:[%s187] sm:$0xff]
        %v231 = vld [vmem:[%s187 + $0x8] sm:$0xff]
        %v232 = vld [vmem:[%s187 + $0x10] sm:$0xff]
        %v233 = vld [vmem:[%s187 + $0x18] sm:$0xff]
        %v234 = vld [vmem:[%s187 + $0x20] sm:$0xff]
        %v235 = vld [vmem:[%s187 + $0x28] sm:$0xff]
        %v236 = vld [vmem:[%s187 + $0x30] sm:$0xff]
        %v237 = vld [vmem:[%s187 + $0x38] sm:$0xff]
        %v238 = vld [vmem:[%s187 + $0x40] sm:$0xff]
        %v239 = vld [vmem:[%s187 + $0x48] sm:$0xff]
        %v240 = vld [vmem:[%s187 + $0x50] sm:$0xff]
        %v241 = vld [vmem:[%s187 + $0x58] sm:$0xff]
        %v242 = vld [vmem:[%s187 + $0x60] sm:$0xff]
        %v243 = vld [vmem:[%s187 + $0x68] sm:$0xff]
        %v244 = vld [vmem:[%s187 + $0x70] sm:$0xff]
        %v245 = vld [vmem:[%s187 + $0x78] sm:$0xff]
        %v246 = vld [vmem:[%s187 + $0x80] sm:$0xff]
        %v247 = vld [vmem:[%s187 + $0x88] sm:$0xff]
        %v248 = vld [vmem:[%s187 + $0x90] sm:$0xff]
        %v249 = vld [vmem:[%s187 + $0x98] sm:$0xff]
        %v250 = vld [vmem:[%s187 + $0xa0] sm:$0xff]
        %v251 = vld [vmem:[%s187 + $0xa8] sm:$0xff]
        %v252 = vld [vmem:[%s187 + $0xb0] sm:$0xff]
        %v253 = vld [vmem:[%s187 + $0xb8] sm:$0xff]
        %v254 = vld [vmem:[%s187 + $0xc0] sm:$0xff]
        %v255 = vld [vmem:[%s187 + $0xc8] sm:$0xff]
        %v256 = vld [vmem:[%s187 + $0xd0] sm:$0xff]
        %v257 = vld [vmem:[%s187 + $0xd8] sm:$0xff]
        %v258 = vld [vmem:[%s187 + $0xe0] sm:$0xff]
        %v259 = vld [vmem:[%s187 + $0xe8] sm:$0xff]
        %v260 = vld [vmem:[%s187 + $0xf0] sm:$0xff]
        %v261 = vld [vmem:[%s187 + $0xf8] sm:$0xff]
        %v262 = vunpack.c.l.bf16 %v230
        %v263 = vunpack.c.h.bf16 %v230
        %v264 = vunpack.c.l.bf16 %v231
        %v265 = vunpack.c.h.bf16 %v231
        %v266 = vunpack.c.l.bf16 %v232
        %v267 = vunpack.c.h.bf16 %v232
        %v268 = vunpack.c.l.bf16 %v233
        %v269 = vunpack.c.h.bf16 %v233
        %v270 = vunpack.c.l.bf16 %v234
        %v271 = vunpack.c.h.bf16 %v234
        %v272 = vunpack.c.l.bf16 %v235
        %v273 = vunpack.c.h.bf16 %v235
        %v274 = vunpack.c.l.bf16 %v236
        %v275 = vunpack.c.h.bf16 %v236
        %v276 = vunpack.c.l.bf16 %v237
        %v277 = vunpack.c.h.bf16 %v237
        %v278 = vunpack.c.l.bf16 %v238
        %v279 = vunpack.c.h.bf16 %v238
        %v280 = vunpack.c.l.bf16 %v239
        %v281 = vunpack.c.h.bf16 %v239
        %v282 = vunpack.c.l.bf16 %v240
        %v283 = vunpack.c.h.bf16 %v240
        %v284 = vunpack.c.l.bf16 %v241
        %v285 = vunpack.c.h.bf16 %v241
        %v286 = vunpack.c.l.bf16 %v242
        %v287 = vunpack.c.h.bf16 %v242
        %v288 = vunpack.c.l.bf16 %v243
        %v289 = vunpack.c.h.bf16 %v243
        %v290 = vunpack.c.l.bf16 %v244
        %v291 = vunpack.c.h.bf16 %v244
        %v292 = vunpack.c.l.bf16 %v245
        %v293 = vunpack.c.h.bf16 %v245
        %v294 = vunpack.c.l.bf16 %v246
        %v295 = vunpack.c.h.bf16 %v246
        %v296 = vunpack.c.l.bf16 %v247
        %v297 = vunpack.c.h.bf16 %v247
        %v298 = vunpack.c.l.bf16 %v248
        %v299 = vunpack.c.h.bf16 %v248
        %v300 = vunpack.c.l.bf16 %v249
        %v301 = vunpack.c.h.bf16 %v249
        %v302 = vunpack.c.l.bf16 %v250
        %v303 = vunpack.c.h.bf16 %v250
        %v304 = vunpack.c.l.bf16 %v251
        %v305 = vunpack.c.h.bf16 %v251
        %v306 = vunpack.c.l.bf16 %v252
        %v307 = vunpack.c.h.bf16 %v252
        %v308 = vunpack.c.l.bf16 %v253
        %v309 = vunpack.c.h.bf16 %v253
        %v310 = vunpack.c.l.bf16 %v254
        %v311 = vunpack.c.h.bf16 %v254
        %v312 = vunpack.c.l.bf16 %v255
        %v313 = vunpack.c.h.bf16 %v255
        %v314 = vunpack.c.l.bf16 %v256
        %v315 = vunpack.c.h.bf16 %v256
        %v316 = vunpack.c.l.bf16 %v257
        %v317 = vunpack.c.h.bf16 %v257
        %v318 = vunpack.c.l.bf16 %v258
        %v319 = vunpack.c.h.bf16 %v258
        %v320 = vunpack.c.l.bf16 %v259
        %v321 = vunpack.c.h.bf16 %v259
        %v322 = vunpack.c.l.bf16 %v260
        %v323 = vunpack.c.h.bf16 %v260
        %v324 = vunpack.c.l.bf16 %v261
        %v325 = vunpack.c.h.bf16 %v261
        %v326 = vmul.f32 %v262, %v262
        %v327 = vmul.f32 %v263, %v263
        %v328 = vmul.f32 %v264, %v264
        %v329 = vmul.f32 %v265, %v265
        %v330 = vmul.f32 %v266, %v266
        %v331 = vmul.f32 %v267, %v267
        %v332 = vmul.f32 %v268, %v268
        %v333 = vmul.f32 %v269, %v269
        %v334 = vmul.f32 %v270, %v270
        %v335 = vmul.f32 %v271, %v271
        %v336 = vmul.f32 %v272, %v272
        %v337 = vmul.f32 %v273, %v273
        %v338 = vmul.f32 %v274, %v274
        %v339 = vmul.f32 %v275, %v275
        %v340 = vmul.f32 %v276, %v276
        %v341 = vmul.f32 %v277, %v277
        %v342 = vmul.f32 %v278, %v278
        %v343 = vmul.f32 %v279, %v279
        %v344 = vmul.f32 %v280, %v280
        %v345 = vmul.f32 %v281, %v281
        %v346 = vmul.f32 %v282, %v282
        %v347 = vmul.f32 %v283, %v283
        %v348 = vmul.f32 %v284, %v284
        %v349 = vmul.f32 %v285, %v285
        %v350 = vmul.f32 %v286, %v286
        %v351 = vmul.f32 %v287, %v287
        %v352 = vmul.f32 %v288, %v288
        %v353 = vmul.f32 %v289, %v289
        %v354 = vmul.f32 %v290, %v290
        %v355 = vmul.f32 %v291, %v291
        %v356 = vmul.f32 %v292, %v292
        %v357 = vmul.f32 %v293, %v293
        %v358 = vmul.f32 %v294, %v294
        %v359 = vmul.f32 %v295, %v295
        %v360 = vmul.f32 %v296, %v296
        %v361 = vmul.f32 %v297, %v297
        %v362 = vmul.f32 %v298, %v298
        %v363 = vmul.f32 %v299, %v299
        %v364 = vmul.f32 %v300, %v300
        %v365 = vmul.f32 %v301, %v301
        %v366 = vmul.f32 %v302, %v302
        %v367 = vmul.f32 %v303, %v303
        %v368 = vmul.f32 %v304, %v304
        %v369 = vmul.f32 %v305, %v305
        %v370 = vmul.f32 %v306, %v306
        %v371 = vmul.f32 %v307, %v307
        %v372 = vmul.f32 %v308, %v308
        %v373 = vmul.f32 %v309, %v309
        %v374 = vmul.f32 %v310, %v310
        %v375 = vmul.f32 %v311, %v311
        %v376 = vmul.f32 %v312, %v312
        %v377 = vmul.f32 %v313, %v313
        %v378 = vmul.f32 %v314, %v314
        %v379 = vmul.f32 %v315, %v315
        %v380 = vmul.f32 %v316, %v316
        %v381 = vmul.f32 %v317, %v317
        %v382 = vmul.f32 %v318, %v318
        %v383 = vmul.f32 %v319, %v319
        %v384 = vmul.f32 %v320, %v320
        %v385 = vmul.f32 %v321, %v321
        %v386 = vmul.f32 %v322, %v322
        %v387 = vmul.f32 %v323, %v323
        %v388 = vmul.f32 %v324, %v324
        %v389 = vmul.f32 %v325, %v325
        %v390 = vadd.f32 %v326, %v327
        %391 = vadd.xlane.f32.xlu0 %v390
        %v392 = vpop.xlane.xlu0 %391
        %v393 = vadd.f32 %v328, %v329
        %394 = vadd.xlane.f32.xlu0 %v393
        %v395 = vpop.xlane.xlu0 %394
        %v396 = vadd.f32 %v330, %v331
        %397 = vadd.xlane.f32.xlu0 %v396
        %v398 = vpop.xlane.xlu0 %397
        %v399 = vadd.f32 %v332, %v333
        %400 = vadd.xlane.f32.xlu0 %v399
        %v401 = vpop.xlane.xlu0 %400
        %v402 = vadd.f32 %v334, %v335
        %403 = vadd.xlane.f32.xlu0 %v402
        %v404 = vpop.xlane.xlu0 %403
        %v405 = vadd.f32 %v336, %v337
        %406 = vadd.xlane.f32.xlu0 %v405
        %v407 = vpop.xlane.xlu0 %406
        %v408 = vadd.f32 %v338, %v339
        %409 = vadd.xlane.f32.xlu0 %v408
        %v410 = vpop.xlane.xlu0 %409
        %v411 = vadd.f32 %v340, %v341
        %412 = vadd.xlane.f32.xlu0 %v411
        %v413 = vpop.xlane.xlu0 %412
        %v414 = vadd.f32 %v342, %v343
        %415 = vadd.xlane.f32.xlu0 %v414
        %v416 = vpop.xlane.xlu0 %415
        %v417 = vadd.f32 %v344, %v345
        %418 = vadd.xlane.f32.xlu0 %v417
        %v419 = vpop.xlane.xlu0 %418
        %v420 = vadd.f32 %v346, %v347
        %421 = vadd.xlane.f32.xlu0 %v420
        %v422 = vpop.xlane.xlu0 %421
        %v423 = vadd.f32 %v348, %v349
        %424 = vadd.xlane.f32.xlu0 %v423
        %v425 = vpop.xlane.xlu0 %424
        %v426 = vadd.f32 %v350, %v351
        %427 = vadd.xlane.f32.xlu0 %v426
        %v428 = vpop.xlane.xlu0 %427
        %v429 = vadd.f32 %v352, %v353
        %430 = vadd.xlane.f32.xlu0 %v429
        %v431 = vpop.xlane.xlu0 %430
        %v432 = vadd.f32 %v354, %v355
        %433 = vadd.xlane.f32.xlu0 %v432
        %v434 = vpop.xlane.xlu0 %433
        %v435 = vadd.f32 %v356, %v357
        %436 = vadd.xlane.f32.xlu0 %v435
        %v437 = vpop.xlane.xlu0 %436
        %v438 = vadd.f32 %v358, %v359
        %439 = vadd.xlane.f32.xlu0 %v438
        %v440 = vpop.xlane.xlu0 %439
        %v441 = vadd.f32 %v360, %v361
        %442 = vadd.xlane.f32.xlu0 %v441
        %v443 = vpop.xlane.xlu0 %442
        %v444 = vadd.f32 %v362, %v363
        %445 = vadd.xlane.f32.xlu0 %v444
        %v446 = vpop.xlane.xlu0 %445
        %v447 = vadd.f32 %v364, %v365
        %448 = vadd.xlane.f32.xlu0 %v447
        %v449 = vpop.xlane.xlu0 %448
        %v450 = vadd.f32 %v366, %v367
        %451 = vadd.xlane.f32.xlu0 %v450
        %v452 = vpop.xlane.xlu0 %451
        %v453 = vadd.f32 %v368, %v369
        %454 = vadd.xlane.f32.xlu0 %v453
        %v455 = vpop.xlane.xlu0 %454
        %v456 = vadd.f32 %v370, %v371
        %457 = vadd.xlane.f32.xlu0 %v456
        %v458 = vpop.xlane.xlu0 %457
        %v459 = vadd.f32 %v372, %v373
        %460 = vadd.xlane.f32.xlu0 %v459
        %v461 = vpop.xlane.xlu0 %460
        %v462 = vadd.f32 %v374, %v375
        %463 = vadd.xlane.f32.xlu0 %v462
        %v464 = vpop.xlane.xlu0 %463
        %v465 = vadd.f32 %v376, %v377
        %466 = vadd.xlane.f32.xlu0 %v465
        %v467 = vpop.xlane.xlu0 %466
        %v468 = vadd.f32 %v378, %v379
        %469 = vadd.xlane.f32.xlu0 %v468
        %v470 = vpop.xlane.xlu0 %469
        %v471 = vadd.f32 %v380, %v381
        %472 = vadd.xlane.f32.xlu0 %v471
        %v473 = vpop.xlane.xlu0 %472
        %v474 = vadd.f32 %v382, %v383
        %475 = vadd.xlane.f32.xlu0 %v474
        %v476 = vpop.xlane.xlu0 %475
        %v477 = vadd.f32 %v384, %v385
        %478 = vadd.xlane.f32.xlu0 %v477
        %v479 = vpop.xlane.xlu0 %478
        %v480 = vadd.f32 %v386, %v387
        %481 = vadd.xlane.f32.xlu0 %v480
        %v482 = vpop.xlane.xlu0 %481
        %v483 = vadd.f32 %v388, %v389
        %484 = vadd.xlane.f32.xlu0 %v483
        %v485 = vpop.xlane.xlu0 %484
        %v486 = vmax.f32 %v392, 1e-24
        %v487 = vmax.f32 %v395, 1e-24
        %v488 = vmax.f32 %v398, 1e-24
        %v489 = vmax.f32 %v401, 1e-24
        %v490 = vmax.f32 %v404, 1e-24
        %v491 = vmax.f32 %v407, 1e-24
        %v492 = vmax.f32 %v410, 1e-24
        %v493 = vmax.f32 %v413, 1e-24
        %v494 = vmax.f32 %v416, 1e-24
        %v495 = vmax.f32 %v419, 1e-24
        %v496 = vmax.f32 %v422, 1e-24
        %v497 = vmax.f32 %v425, 1e-24
        %v498 = vmax.f32 %v428, 1e-24
        %v499 = vmax.f32 %v431, 1e-24
        %v500 = vmax.f32 %v434, 1e-24
        %v501 = vmax.f32 %v437, 1e-24
        %v502 = vmax.f32 %v440, 1e-24
        %v503 = vmax.f32 %v443, 1e-24
        %v504 = vmax.f32 %v446, 1e-24
        %v505 = vmax.f32 %v449, 1e-24
        %v506 = vmax.f32 %v452, 1e-24
        %v507 = vmax.f32 %v455, 1e-24
        %v508 = vmax.f32 %v458, 1e-24
        %v509 = vmax.f32 %v461, 1e-24
        %v510 = vmax.f32 %v464, 1e-24
        %v511 = vmax.f32 %v467, 1e-24
        %v512 = vmax.f32 %v470, 1e-24
        %v513 = vmax.f32 %v473, 1e-24
        %v514 = vmax.f32 %v476, 1e-24
        %v515 = vmax.f32 %v479, 1e-24
        %v516 = vmax.f32 %v482, 1e-24
        %v517 = vmax.f32 %v485, 1e-24
        %v518 = vrsqrt.pop %v486
        %v519 = vrsqrt.pop %v487
        %v520 = vrsqrt.pop %v488
        %v521 = vrsqrt.pop %v489
        %v522 = vrsqrt.pop %v490
        %v523 = vrsqrt.pop %v491
        %v524 = vrsqrt.pop %v492
        %v525 = vrsqrt.pop %v493
        %v526 = vrsqrt.pop %v494
        %v527 = vrsqrt.pop %v495
        %v528 = vrsqrt.pop %v496
        %v529 = vrsqrt.pop %v497
        %v530 = vrsqrt.pop %v498
        %v531 = vrsqrt.pop %v499
        %v532 = vrsqrt.pop %v500
        %v533 = vrsqrt.pop %v501
        %v534 = vrsqrt.pop %v502
        %v535 = vrsqrt.pop %v503
        %v536 = vrsqrt.pop %v504
        %v537 = vrsqrt.pop %v505
        %v538 = vrsqrt.pop %v506
        %v539 = vrsqrt.pop %v507
        %v540 = vrsqrt.pop %v508
        %v541 = vrsqrt.pop %v509
        %v542 = vrsqrt.pop %v510
        %v543 = vrsqrt.pop %v511
        %v544 = vrsqrt.pop %v512
        %v545 = vrsqrt.pop %v513
        %v546 = vrsqrt.pop %v514
        %v547 = vrsqrt.pop %v515
        %v548 = vrsqrt.pop %v516
        %v549 = vrsqrt.pop %v517
        %v582 = vunpack.c.l.b16 %v230
        %v583 = vunpack.c.h.b16 %v230
        %v584 = vunpack.c.l.b16 %v231
        %v585 = vunpack.c.h.b16 %v231
        %v586 = vunpack.c.l.b16 %v232
        %v587 = vunpack.c.h.b16 %v232
        %v588 = vunpack.c.l.b16 %v233
        %v589 = vunpack.c.h.b16 %v233
        %v590 = vunpack.c.l.b16 %v234
        %v591 = vunpack.c.h.b16 %v234
        %v592 = vunpack.c.l.b16 %v235
        %v593 = vunpack.c.h.b16 %v235
        %v594 = vunpack.c.l.b16 %v236
        %v595 = vunpack.c.h.b16 %v236
        %v596 = vunpack.c.l.b16 %v237
        %v597 = vunpack.c.h.b16 %v237
        %v598 = vunpack.c.l.b16 %v238
        %v599 = vunpack.c.h.b16 %v238
        %v600 = vunpack.c.l.b16 %v239
        %v601 = vunpack.c.h.b16 %v239
        %v602 = vunpack.c.l.b16 %v240
        %v603 = vunpack.c.h.b16 %v240
        %v604 = vunpack.c.l.b16 %v241
        %v605 = vunpack.c.h.b16 %v241
        %v606 = vunpack.c.l.b16 %v242
        %v607 = vunpack.c.h.b16 %v242
        %v608 = vunpack.c.l.b16 %v243
        %v609 = vunpack.c.h.b16 %v243
        %v610 = vunpack.c.l.b16 %v244
        %v611 = vunpack.c.h.b16 %v244
        %v612 = vunpack.c.l.b16 %v245
        %v613 = vunpack.c.h.b16 %v245
        %v614 = vunpack.c.l.b16 %v246
        %v615 = vunpack.c.h.b16 %v246
        %v616 = vunpack.c.l.b16 %v247
        %v617 = vunpack.c.h.b16 %v247
        %v618 = vunpack.c.l.b16 %v248
        %v619 = vunpack.c.h.b16 %v248
        %v620 = vunpack.c.l.b16 %v249
        %v621 = vunpack.c.h.b16 %v249
        %v622 = vunpack.c.l.b16 %v250
        %v623 = vunpack.c.h.b16 %v250
        %v624 = vunpack.c.l.b16 %v251
        %v625 = vunpack.c.h.b16 %v251
        %v626 = vunpack.c.l.b16 %v252
        %v627 = vunpack.c.h.b16 %v252
        %v628 = vunpack.c.l.b16 %v253
        %v629 = vunpack.c.h.b16 %v253
        %v630 = vunpack.c.l.b16 %v254
        %v631 = vunpack.c.h.b16 %v254
        %v632 = vunpack.c.l.b16 %v255
        %v633 = vunpack.c.h.b16 %v255
        %v634 = vunpack.c.l.b16 %v256
        %v635 = vunpack.c.h.b16 %v256
        %v636 = vunpack.c.l.b16 %v257
        %v637 = vunpack.c.h.b16 %v257
        %v638 = vunpack.c.l.b16 %v258
        %v639 = vunpack.c.h.b16 %v258
        %v640 = vunpack.c.l.b16 %v259
        %v641 = vunpack.c.h.b16 %v259
        %v642 = vunpack.c.l.b16 %v260
        %v643 = vunpack.c.h.b16 %v260
        %v644 = vunpack.c.l.b16 %v261
        %v645 = vunpack.c.h.b16 %v261
        %v646 = vpack.c.b16 %v584, %v582
        %v647 = vpack.c.b16 %v585, %v583
        %v648 = vpack.c.b16 %v588, %v586
        %v649 = vpack.c.b16 %v589, %v587
        %v650 = vpack.c.b16 %v592, %v590
        %v651 = vpack.c.b16 %v593, %v591
        %v652 = vpack.c.b16 %v596, %v594
        %v653 = vpack.c.b16 %v597, %v595
        %v654 = vpack.c.b16 %v600, %v598
        %v655 = vpack.c.b16 %v601, %v599
        %v656 = vpack.c.b16 %v604, %v602
        %v657 = vpack.c.b16 %v605, %v603
        %v658 = vpack.c.b16 %v608, %v606
        %v659 = vpack.c.b16 %v609, %v607
        %v660 = vpack.c.b16 %v612, %v610
        %v661 = vpack.c.b16 %v613, %v611
        %v662 = vpack.c.b16 %v616, %v614
        %v663 = vpack.c.b16 %v617, %v615
        %v664 = vpack.c.b16 %v620, %v618
        %v665 = vpack.c.b16 %v621, %v619
        %v666 = vpack.c.b16 %v624, %v622
        %v667 = vpack.c.b16 %v625, %v623
        %v668 = vpack.c.b16 %v628, %v626
        %v669 = vpack.c.b16 %v629, %v627
        %v670 = vpack.c.b16 %v632, %v630
        %v671 = vpack.c.b16 %v633, %v631
        %v672 = vpack.c.b16 %v636, %v634
        %v673 = vpack.c.b16 %v637, %v635
        %v674 = vpack.c.b16 %v640, %v638
        %v675 = vpack.c.b16 %v641, %v639
        %v676 = vpack.c.b16 %v644, %v642
        %v677 = vpack.c.b16 %v645, %v643
        %710 = vmatprep.subr.bf16.mxu0 %v661
        %711 = vmatpush1.bf16.xpose.msra.mxu0 %v660
        %712 = vmatprep.subr.bf16.mxu0 %v659
        %713 = vmatpush1.bf16.xpose.msra.mxu0 %v658
        %714 = vmatprep.subr.bf16.mxu0 %v657
        %715 = vmatpush1.bf16.xpose.msra.mxu0 %v656
        %716 = vmatprep.subr.bf16.mxu0 %v655
        %717 = vmatpush1.bf16.xpose.msra.mxu0 %v654
        %718 = vmatprep.subr.bf16.mxu0 %v653
        %719 = vmatpush1.bf16.xpose.msra.mxu0 %v652
        %720 = vmatprep.subr.bf16.mxu0 %v651
        %721 = vmatpush1.bf16.xpose.msra.mxu0 %v650
        %722 = vmatprep.subr.bf16.mxu0 %v649
        %723 = vmatpush1.bf16.xpose.msra.mxu0 %v648
        %724 = vmatprep.subr.bf16.mxu0 %v647
        %725 = vmatpush1.bf16.xpose.msra.mxu0 %v646
        %726 = vmatprep.subr.bf16.mxu0 %v677
        %727 = vmatpush2.bf16.xpose.msra.mxu0 %v676
        %728 = vmatprep.subr.bf16.mxu0 %v675
        %729 = vmatpush2.bf16.xpose.msra.mxu0 %v674
        %730 = vmatprep.subr.bf16.mxu0 %v673
        %731 = vmatpush2.bf16.xpose.msra.mxu0 %v672
        %732 = vmatprep.subr.bf16.mxu0 %v671
        %733 = vmatpush2.bf16.xpose.msra.mxu0 %v670
        %734 = vmatprep.subr.bf16.mxu0 %v669
        %735 = vmatpush2.bf16.xpose.msra.mxu0 %v668
        %736 = vmatprep.subr.bf16.mxu0 %v667
        %737 = vmatpush2.bf16.xpose.msra.mxu0 %v666
        %738 = vmatprep.subr.bf16.mxu0 %v665
        %739 = vmatpush2.bf16.xpose.msra.mxu0 %v664
        %740 = vmatprep.subr.bf16.mxu0 %v663
        %741 = vmatpush2.bf16.xpose.msra.mxu0 %v662
        %742 = vmatprep.mubr.bf16.mxu0 %v229
        %743 = vmatmul.mubr.bf16.gmra.mxu0 %v228
        %v744 = vpop.f32.mrf.mxu0
        %v745 = vadd.f32 0.0, %v744
        %v746 = vpop.f32.mrf.mxu0
        %v747 = vadd.f32 0.0, %v746
        %v748 = vpop.f32.mrf.mxu0
        %v749 = vpop.f32.mrf.mxu0
        %750 = vdwg.mxu0
        %751 = vxpose.xlu0.b32.start [1/16] %v518, 128
        %752 = vxpose.xlu0.b32.cont [2/16] %v519, 128
        %753 = vxpose.xlu0.b32.cont [3/16] %v520, 128
        %754 = vxpose.xlu0.b32.cont [4/16] %v521, 128
        %755 = vxpose.xlu0.b32.cont [5/16] %v522, 128
        %756 = vxpose.xlu0.b32.cont [6/16] %v523, 128
        %757 = vxpose.xlu0.b32.cont [7/16] %v524, 128
        %758 = vxpose.xlu0.b32.cont [8/16] %v525, 128
        %759 = vxpose.xlu0.b32.cont [9/16] %v526, 128
        %760 = vxpose.xlu0.b32.cont [10/16] %v527, 128
        %761 = vxpose.xlu0.b32.cont [11/16] %v528, 128
        %762 = vxpose.xlu0.b32.cont [12/16] %v529, 128
        %763 = vxpose.xlu0.b32.cont [13/16] %v530, 128
        %764 = vxpose.xlu0.b32.cont [14/16] %v531, 128
        %765 = vxpose.xlu0.b32.cont [15/16] %v532, 128
        %766 = vxpose.xlu0.b32.end [16/16] %v533, 128
        %v767 = vpop.trf.xlu0
        %v768 = vpop.trf.xlu0
        %v769 = vpop.trf.xlu0
        %v770 = vpop.trf.xlu0
        %v771 = vpop.trf.xlu0
        %v772 = vpop.trf.xlu0
        %v773 = vpop.trf.xlu0
        %v774 = vpop.trf.xlu0
        %v775 = vpop.trf.xlu0
        %v776 = vpop.trf.xlu0
        %v777 = vpop.trf.xlu0
        %v778 = vpop.trf.xlu0
        %v779 = vpop.trf.xlu0
        %v780 = vpop.trf.xlu0
        %v781 = vpop.trf.xlu0
        %v782 = vpop.trf.xlu0
        %783 = vxpose.xlu0.b32.start [1/16] %v534, 128
        %784 = vxpose.xlu0.b32.cont [2/16] %v535, 128
        %785 = vxpose.xlu0.b32.cont [3/16] %v536, 128
        %786 = vxpose.xlu0.b32.cont [4/16] %v537, 128
        %787 = vxpose.xlu0.b32.cont [5/16] %v538, 128
        %788 = vxpose.xlu0.b32.cont [6/16] %v539, 128
        %789 = vxpose.xlu0.b32.cont [7/16] %v540, 128
        %790 = vxpose.xlu0.b32.cont [8/16] %v541, 128
        %791 = vxpose.xlu0.b32.cont [9/16] %v542, 128
        %792 = vxpose.xlu0.b32.cont [10/16] %v543, 128
        %793 = vxpose.xlu0.b32.cont [11/16] %v544, 128
        %794 = vxpose.xlu0.b32.cont [12/16] %v545, 128
        %795 = vxpose.xlu0.b32.cont [13/16] %v546, 128
        %796 = vxpose.xlu0.b32.cont [14/16] %v547, 128
        %797 = vxpose.xlu0.b32.cont [15/16] %v548, 128
        %798 = vxpose.xlu0.b32.end [16/16] %v549, 128
        %v799 = vpop.trf.xlu0
        %v800 = vpop.trf.xlu0
        %v801 = vpop.trf.xlu0
        %v802 = vpop.trf.xlu0
        %v803 = vpop.trf.xlu0
        %v804 = vpop.trf.xlu0
        %v805 = vpop.trf.xlu0
        %v806 = vpop.trf.xlu0
        %v807 = vpop.trf.xlu0
        %v808 = vpop.trf.xlu0
        %v809 = vpop.trf.xlu0
        %v810 = vpop.trf.xlu0
        %v811 = vpop.trf.xlu0
        %v812 = vpop.trf.xlu0
        %v813 = vpop.trf.xlu0
        %v814 = vpop.trf.xlu0
        %v815 = vlaneseq
        %v816 = vshrl.u32 %v815, 7
        %v817 = vsub.s32 0, %v816
        %v818 = vrot.slane %v767, %v817
        %v819 = vlaneseq
        %v820 = vshrl.u32 %v819, 7
        %v821 = vsub.s32 0, %v820
        %v822 = vrot.slane %v799, %v821
        %v823 = vmul.f32 %v745, %v818
        %v824 = vmul.f32 %v747, %v822
        %v825 = vlaneseq
        %v826 = vand.u32 %v825, 127
        %v827 = vadd.s32 %v826, 128
        %s828 = smul.u32 %s21, 256
        %v829 = vstv %s828
        %v830 = vadd.s32 %v826, %v829
        %v831 = vadd.s32 %v827, %v829
        %v832 = vld [vmem:[%s2] sm:$0xff]
        %833 = vset.pattern.permute.xlu0 0
        %834 = vperm.xlu0 %833, %v832
        %v835 = vpop.permute.xlu0 %834
        %vm836 = vcmp.eq.s32.totalorder %v830, %v835
        %vm837 = vcmp.eq.s32.totalorder %v831, %v835
        %v838 = vsub.f32 %v823, 0.35
        %v839 = vsub.f32 %v824, 0.35
        %v840 = vsel %vm836, %v838, %v823
        %v841 = vsel %vm837, %v839, %v824
        %v842 = vmul.f32 %v840, 64.0
        %v843 = vmul.f32 %v841, 64.0
        %vm844 = vcmp.lt.s32.totalorder %v830, 1000
        %vm845 = vcmp.lt.s32.totalorder %v831, 1000
        %v846 = vsel %vm844, %v842, 0.0
        %v847 = vsel %vm845, %v843, 0.0
        %848 = vst [vmem:[%s209] sm:$0xff] %v846
        %849 = vst [vmem:[%s209 + $0x8] sm:$0xff] %v847
        %s850 = sand.u32 %s97, 1
        %s851 = scalar_lea.sflag [#allocation4], %s850
        %s852 = sand.u32 %s97, 1
        %s853 = smul.addr %s852, 16
        %s854 = scalar_lea.vmem [#allocation7], %s853
        // Predicated region
        $region41: #{tpu_custom_call.1} parent=31 // pred_check
          %p855 = pneg %p107
        $region42: #{tpu_custom_call.1} parent=31 // pred_check_branch
          %857 = sbr.rel (%p855) target = $region44
        $region43: #{tpu_custom_call.1} parent=31 // pred_region
          %s858 = smul.u32 2, %s21
          %s860 = ssub.s32 256, 256
          %861 = vsyncadd %s851, %s860
          %s862 = smul.addr %s858, 128
          %s863 = scalar_lea.hbm %s3, %s862
          %s865 = sshll.u32 %s854, 4
          %s866 = int_to_ptr.vmem [resolvable:$true] %s865
          %868 = dma.vmem_to_hbm [thread:$0]  %s866, 256, %s863, %s851
        $region44: #{tpu_custom_call.1} parent=31 // pred_fallthru
          _
      $region32: #{tpu_custom_call.1} parent=5 // pred_fallthru
        _
      %p869 = scmp.le.s32.totalorder 2, %s16
      // Predicated region
      $region45: #{tpu_custom_call.1} parent=5 // pred_check
        %p870 = pneg %p869
      $region46: #{tpu_custom_call.1} parent=5 // pred_check_branch
        %872 = sbr.rel (%p870) target = $region48
      $region47: #{tpu_custom_call.1} parent=5 // pred_region
        %s873 = ssub.s32 %s16, 2
        // Predicated region
        $region49: #{tpu_custom_call.1} parent=47 // pred_check
          %p874 = pneg %p113
        $region50: #{tpu_custom_call.1} parent=47 // pred_check_branch
          %876 = sbr.rel (%p874) target = $region52
        $region51: #{tpu_custom_call.1} parent=47 // pred_region
          %s877 = sand.u32 %s98, 1
          %s878 = scalar_lea.sflag [#allocation4], %s877
          %s879 = sand.u32 %s98, 1
          %s880 = smul.addr %s879, 16
          %s881 = scalar_lea.vmem [#allocation7], %s880
          %882 = dma.done %s878, 256
        $region52: #{tpu_custom_call.1} parent=47 // pred_fallthru
          _
      $region48: #{tpu_custom_call.1} parent=5 // pred_fallthru
        _
    $region6: #{tpu_custom_call.1} parent=1 // loop_footer
      %s20 = sadd.s32 1, %s16
    $region7: #{tpu_custom_call.1} parent=1 // loop_footer_branch
      %15 = sbr.rel target = $region3
    $region8: #{tpu_custom_call.1} parent=1 // loop_exit
      _
    %883 = vsyncpa [#allocation3], 1
    %s884 = scalar_lea.sflag [#allocation3], 1
    %885 = vsyncpa %s884, 1
    %886 = vsyncpa [#allocation6], 1
    %s887 = scalar_lea.sflag [#allocation6], 1
    %888 = vsyncpa %s887, 1
    %889 = vsyncpa [#allocation4], 1
    %s890 = scalar_lea.sflag [#allocation4], 1
    %891 = vsyncpa %s890, 1

</llo_original>
